<compile_context>
chip_gen: v5e
topology: v5e:2x2
jax: 0.10.0
libtpu: 0.0.40
codegen_flags: <defaults>
</compile_context>

<pallas_src>
import jax
import jax.numpy as jnp
from jax.experimental import pallas as pl
from jax.experimental.pallas import tpu as pltpu

IN_F = 784
HID = 200
EPS = 1e-5
NEG_SLOPE = 0.02


def discriminator_kernel(x_ref, w1_ref, b1_ref, w2e_ref, b2e_ref, o_ref):
    # --- Linear(784, 200) on the MXU: bf16 operands, f32 accumulation ---
    x = x_ref[...]
    if x.dtype != jnp.bfloat16:
        # In-register cast (VPU, has slack) — avoids a separate HBM convert pass.
        x = x.astype(jnp.bfloat16)
    h = jnp.dot(x, w1_ref[...], preferred_element_type=jnp.float32)   # (TB, 200) f32
    h = h + b1_ref[...]                                               # (1, 200) broadcast

    # --- LeakyReLU(negative_slope=0.02) ---
    h = jnp.where(h > 0, h, NEG_SLOPE * h)

    # --- LayerNorm(200), eps=1e-5, one-pass stats (clamped E[x^2]-E[x]^2) ---
    s1 = jnp.sum(h, axis=-1, keepdims=True)        # (TB, 1)
    s2 = jnp.sum(h * h, axis=-1, keepdims=True)    # (TB, 1)
    inv_n = jnp.float32(1.0 / HID)
    mean = s1 * inv_n
    var = jnp.maximum(s2 * inv_n - mean * mean, 0.0)
    inv_std = jax.lax.rsqrt(var + EPS)
    z = (h - mean) * inv_std                       # gamma/beta folded into w2_eff/b2_eff

    # --- Linear(200, 1) as VPU multiply + lane reduction, then Sigmoid ---
    logit = jnp.sum(z * w2e_ref[...], axis=-1, keepdims=True) + b2e_ref[...]   # (TB, 1)
    o_ref[...] = (1.0 / (1.0 + jnp.exp(-logit))).astype(o_ref.dtype)


def _round_up(v, m):
    return ((v + m - 1) // m) * m


def _pick_batch_tile(B, tb_max):
    """Batch-tile size: big enough to amortize per-step overhead, sublane-aligned,
    and chosen so the grid has an even number of tiles when there is enough work
    for v7x's two TensorCores (harmless extra step on single-TC chips)."""
    if B > tb_max:
        n_tiles = pl.cdiv(B, tb_max)
        if n_tiles % 2:
            n_tiles += 1            # even grid -> both v7x TCs get work
    elif B >= 1024:
        n_tiles = 2                 # enough rows to be worth splitting across TCs
    else:
        n_tiles = 1
    align = 16 if B >= 16 else 8    # 16 for bf16 sublane packing, 8 minimum
    tb = _round_up(pl.cdiv(B, n_tiles), align)
    return min(tb, _round_up(B, 8))


def discriminator_forward(x, params, *, tb_max=None):
    """x: (B, 784) float32 or bfloat16 -> (B, 1) float32."""
    w1, b1, gamma, beta, w2, b2 = params
    B = x.shape[0]

    if tb_max is None:
        # bf16 inputs stream half the bytes, so they can take a 2x larger tile at
        # the same DMA-per-step / VMEM budget. Producing x in bf16 upstream is the
        # preferred fast path; f32 is accepted and cast in-kernel.
        tb_max = 4096 if x.dtype == jnp.bfloat16 else 2048

    TB = _pick_batch_tile(B, tb_max)
    grid_b = pl.cdiv(B, TB)

    # Fold LayerNorm affine (gamma, beta) into the final projection:
    #   ((z*gamma + beta) . w2) + b2 == (z . (gamma*w2)) + (beta . w2 + b2)
    w2_flat = w2.reshape(HID)
    w2_eff = (gamma.reshape(HID) * w2_flat).reshape(1, HID)
    b2_eff = (b2.reshape(1, 1) + jnp.sum(beta.reshape(HID) * w2_flat)).reshape(1, 1)

    w1_bf = w1.astype(jnp.bfloat16)     # tiny one-time cast; MXU bf16 weight
    b1_r = b1.reshape(1, HID)

    resident = lambda a: pl.BlockSpec(a.shape, lambda i: (0,) * a.ndim)

    out = pl.pallas_call(
        discriminator_kernel,
        out_shape=jax.ShapeDtypeStruct((B, 1), jnp.float32),
        grid=(grid_b,),
        in_specs=[
            pl.BlockSpec((TB, IN_F), lambda i: (i, 0)),   # x: streamed per batch tile
            resident(w1_bf),                              # weights stay VMEM-resident
            resident(b1_r),
            resident(w2_eff),
            resident(b2_eff),
        ],
        out_specs=pl.BlockSpec((TB, 1), lambda i: (i, 0)),
        compiler_params=pltpu.CompilerParams(
            dimension_semantics=("parallel",),
            vmem_limit_bytes=64 * 1024 * 1024,
        ),
    )(x, w1_bf, b1_r, w2_eff, b2_eff)

    # NOTE: rows >= B in a ragged last tile contain garbage (stale VMEM through the
    # rsqrt/exp chain) — harmless, sliced off here. Do not "fix" by padding x in HBM.
    return out[:B]


def init_params(key):
    """Deterministic init matching the shapes of the PyTorch module."""
    k1, k2, k3, k4 = jax.random.split(key, 4)
    lim1 = 1.0 / jnp.sqrt(float(IN_F))
    w1 = jax.random.uniform(k1, (IN_F, HID), jnp.float32, -lim1, lim1)
    b1 = jax.random.uniform(k2, (1, HID), jnp.float32, -lim1, lim1)
    gamma = jnp.ones((1, HID), jnp.float32)
    beta = jnp.zeros((1, HID), jnp.float32)
    lim2 = 1.0 / jnp.sqrt(float(HID))
    w2 = jax.random.uniform(k3, (HID, 1), jnp.float32, -lim2, lim2)
    b2 = jax.random.uniform(k4, (1, 1), jnp.float32, -lim2, lim2)
    return (w1, b1, gamma, beta, w2, b2)


def reference_forward(x, params):
    """Pure-JAX reference (same bf16 cast of x/w1 as the kernel, f32 math otherwise)."""
    w1, b1, gamma, beta, w2, b2 = params
    xb = x.astype(jnp.bfloat16).astype(jnp.float32)
    w1b = w1.astype(jnp.bfloat16).astype(jnp.float32)
    h = xb @ w1b + b1
    h = jnp.where(h > 0, h, NEG_SLOPE * h)
    mean = jnp.mean(h, axis=-1, keepdims=True)
    var = jnp.mean((h - mean) ** 2, axis=-1, keepdims=True)
    hn = (h - mean) / jnp.sqrt(var + EPS) * gamma + beta
    return jax.nn.sigmoid(hn @ w2 + b2)


if __name__ == "__main__":
    key = jax.random.PRNGKey(0)
    k_x, k_p = jax.random.split(key)

    B = 8
    x = jax.random.normal(k_x, (B, IN_F), jnp.float32)
    params = init_params(k_p)

    out = discriminator_forward(x, params)
    out = jax.block_until_ready(out)

    ref = reference_forward(x, params)
    assert out.shape == (B, 1), out.shape
    assert jnp.allclose(out, ref, atol=2e-3, rtol=2e-3), (out, ref)

    # TODO(synk): training utilities of the module (BCELoss, Adam step, plotting)
    # are outside forward() and intentionally not implemented as kernels.

    print("KERNEL_OK")
</pallas_src>

<mosaic_0001>
module attributes {stable_mosaic.version = 11 : i64} {
  func.func @discriminator_kernel(%arg0: i32, %arg1: memref<8x784xf32, #tpu.memory_space<vmem>>, %arg2: memref<784x200xbf16, #tpu.memory_space<vmem>>, %arg3: memref<1x200xf32, #tpu.memory_space<vmem>>, %arg4: memref<1x200xf32, #tpu.memory_space<vmem>>, %arg5: memref<1x1xf32, #tpu.memory_space<vmem>>, %arg6: memref<8x1xf32, #tpu.memory_space<vmem>>) attributes {dimension_semantics = [#tpu.dimension_semantics<parallel>], iteration_bounds = array<i64: 1>, scalar_prefetch = 0 : i64, scratch_operands = 0 : i64, tpu.core_type = #tpu.core_type<tc>, window_params = [{transform_indices = @transform_0, window_bounds = array<i64: 8, 784>}, {pipeline_mode = #tpu.pipeline_mode<synchronous>, transform_indices = @transform_1, window_bounds = array<i64: 784, 200>}, {pipeline_mode = #tpu.pipeline_mode<synchronous>, transform_indices = @transform_2, window_bounds = array<i64: 1, 200>}, {pipeline_mode = #tpu.pipeline_mode<synchronous>, transform_indices = @transform_3, window_bounds = array<i64: 1, 200>}, {pipeline_mode = #tpu.pipeline_mode<synchronous>, transform_indices = @transform_4, window_bounds = array<i64: 1, 1>}, {transform_indices = @transform_5, window_bounds = array<i64: 8, 1>}]} {
    %c0 = arith.constant 0 : index
    %c0_0 = arith.constant 0 : index
    %0 = vector.load %arg1[%c0, %c0_0] : memref<8x784xf32, #tpu.memory_space<vmem>>, vector<8x784xf32>
    %1 = arith.truncf %0 : vector<8x784xf32> to vector<8x784xbf16>
    %c0_1 = arith.constant 0 : index
    %c0_2 = arith.constant 0 : index
    %2 = vector.load %arg2[%c0_1, %c0_2] : memref<784x200xbf16, #tpu.memory_space<vmem>>, vector<784x200xbf16>
    %cst = arith.constant dense<0.000000e+00> : vector<8x200xf32>
    %3 = tpu.matmul %1, %2, %cst {dimension_numbers = #tpu.dot_dimension_numbers<[1], [0], [0], [1], [0, 0, 1, 1], [], []>} : vector<8x784xbf16>, vector<784x200xbf16>, vector<8x200xf32> -> vector<8x200xf32>
    %c0_3 = arith.constant 0 : index
    %c0_4 = arith.constant 0 : index
    %4 = vector.load %arg3[%c0_3, %c0_4] : memref<1x200xf32, #tpu.memory_space<vmem>>, vector<1x200xf32>
    %5 = vector.broadcast %4 : vector<1x200xf32> to vector<8x200xf32>
    %6 = arith.addf %3, %5 : vector<8x200xf32>
    %cst_5 = arith.constant 0.000000e+00 : f32
    %7 = vector.broadcast %cst_5 : f32 to vector<8x200xf32>
    %8 = arith.cmpf ogt, %6, %7 : vector<8x200xf32>
    %cst_6 = arith.constant 2.000000e-02 : f32
    %9 = vector.broadcast %cst_6 : f32 to vector<8x200xf32>
    %10 = arith.mulf %9, %6 : vector<8x200xf32>
    %11 = arith.select %8, %6, %10 : vector<8x200xi1>, vector<8x200xf32>
    %cst_7 = arith.constant dense<0.000000e+00> : vector<8xf32>
    %12 = vector.multi_reduction <add>, %11, %cst_7 [1] : vector<8x200xf32> to vector<8xf32>
    %13 = vector.shape_cast %12 : vector<8xf32> to vector<8x1xf32>
    %14 = arith.mulf %11, %11 : vector<8x200xf32>
    %cst_8 = arith.constant dense<0.000000e+00> : vector<8xf32>
    %15 = vector.multi_reduction <add>, %14, %cst_8 [1] : vector<8x200xf32> to vector<8xf32>
    %16 = vector.shape_cast %15 : vector<8xf32> to vector<8x1xf32>
    %cst_9 = arith.constant 5.000000e-03 : f32
    %17 = vector.broadcast %cst_9 : f32 to vector<8x1xf32>
    %18 = arith.mulf %13, %17 : vector<8x1xf32>
    %cst_10 = arith.constant 5.000000e-03 : f32
    %19 = vector.broadcast %cst_10 : f32 to vector<8x1xf32>
    %20 = arith.mulf %16, %19 : vector<8x1xf32>
    %21 = arith.mulf %18, %18 : vector<8x1xf32>
    %22 = arith.subf %20, %21 : vector<8x1xf32>
    %cst_11 = arith.constant 0.000000e+00 : f32
    %23 = vector.broadcast %cst_11 : f32 to vector<8x1xf32>
    %24 = arith.maximumf %22, %23 : vector<8x1xf32>
    %cst_12 = arith.constant 9.99999974E-6 : f32
    %25 = vector.broadcast %cst_12 : f32 to vector<8x1xf32>
    %26 = arith.addf %24, %25 : vector<8x1xf32>
    %27 = math.rsqrt %26 : vector<8x1xf32>
    %28 = vector.broadcast %18 : vector<8x1xf32> to vector<8x200xf32>
    %29 = arith.subf %11, %28 : vector<8x200xf32>
    %30 = vector.broadcast %27 : vector<8x1xf32> to vector<8x200xf32>
    %31 = arith.mulf %29, %30 : vector<8x200xf32>
    %c0_13 = arith.constant 0 : index
    %c0_14 = arith.constant 0 : index
    %32 = vector.load %arg4[%c0_13, %c0_14] : memref<1x200xf32, #tpu.memory_space<vmem>>, vector<1x200xf32>
    %33 = vector.broadcast %32 : vector<1x200xf32> to vector<8x200xf32>
    %34 = arith.mulf %31, %33 : vector<8x200xf32>
    %cst_15 = arith.constant dense<0.000000e+00> : vector<8xf32>
    %35 = vector.multi_reduction <add>, %34, %cst_15 [1] : vector<8x200xf32> to vector<8xf32>
    %36 = vector.shape_cast %35 : vector<8xf32> to vector<8x1xf32>
    %c0_16 = arith.constant 0 : index
    %c0_17 = arith.constant 0 : index
    %37 = vector.load %arg5[%c0_16, %c0_17] : memref<1x1xf32, #tpu.memory_space<vmem>>, vector<1x1xf32>
    %38 = vector.broadcast %37 : vector<1x1xf32> to vector<8x1xf32>
    %39 = arith.addf %36, %38 : vector<8x1xf32>
    %cst_18 = arith.constant 0.000000e+00 : f32
    %40 = vector.broadcast %cst_18 : f32 to vector<8x1xf32>
    %41 = arith.subf %40, %39 : vector<8x1xf32>
    %42 = math.exp %41 : vector<8x1xf32>
    %cst_19 = arith.constant 1.000000e+00 : f32
    %43 = vector.broadcast %cst_19 : f32 to vector<8x1xf32>
    %44 = arith.addf %43, %42 : vector<8x1xf32>
    %cst_20 = arith.constant 1.000000e+00 : f32
    %45 = vector.broadcast %cst_20 : f32 to vector<8x1xf32>
    %46 = arith.divf %45, %44 : vector<8x1xf32>
    %c0_21 = arith.constant 0 : index
    %c0_22 = arith.constant 0 : index
    %47 = vector.load %arg6[%c0_21, %c0_22] : memref<8x1xf32, #tpu.memory_space<vmem>>, vector<8x1xf32>
    tpu.vector_store %arg6[%c0_21, %c0_22], %46 {strides = array<i32>} : memref<8x1xf32, #tpu.memory_space<vmem>>, vector<8x1xf32>,
    return
  }
  func.func @transform_0(%arg0: i32) -> (i32, i32) {
    %c0_i32 = arith.constant 0 : i32
    %c0_i32_0 = arith.constant 0 : i32
    return %arg0, %c0_i32 : i32, i32
  }
  func.func @transform_1(%arg0: i32) -> (i32, i32) {
    %c0_i32 = arith.constant 0 : i32
    %c0_i32_0 = arith.constant 0 : i32
    %c0_i32_1 = arith.constant 0 : i32
    return %c0_i32, %c0_i32_0 : i32, i32
  }
  func.func @transform_2(%arg0: i32) -> (i32, i32) {
    %c0_i32 = arith.constant 0 : i32
    %c0_i32_0 = arith.constant 0 : i32
    %c0_i32_1 = arith.constant 0 : i32
    return %c0_i32, %c0_i32_0 : i32, i32
  }
  func.func @transform_3(%arg0: i32) -> (i32, i32) {
    %c0_i32 = arith.constant 0 : i32
    %c0_i32_0 = arith.constant 0 : i32
    %c0_i32_1 = arith.constant 0 : i32
    return %c0_i32, %c0_i32_0 : i32, i32
  }
  func.func @transform_4(%arg0: i32) -> (i32, i32) {
    %c0_i32 = arith.constant 0 : i32
    %c0_i32_0 = arith.constant 0 : i32
    %c0_i32_1 = arith.constant 0 : i32
    return %c0_i32, %c0_i32_0 : i32, i32
  }
  func.func @transform_5(%arg0: i32) -> (i32, i32) {
    %c0_i32 = arith.constant 0 : i32
    %c0_i32_0 = arith.constant 0 : i32
    return %arg0, %c0_i32 : i32, i32
  }
}

</mosaic_0001>

<llo_original>
// kernel: tpu_custom_call.1
$region0: #{tpu_custom_call.1}
  #allocation0 [shape = 'u32[]', space=smem, size = 0x4, offset = 0x4, fixed_abs, tag = 'smem constant byte address 0x4 - core index']
  #allocation1 [shape = 'u32[72,128]{1,0:T(1,128)}', space=vmem, size = 0x9000, scoped, tag = 'internal scratch']
  #allocation2 [shape = 'f32[1,1]{1,0:T(1,128)S(1)}', space=vmem, size = 0x200, scoped, tag = 'scoped memory for tpu_custom_call.1']
  %s0 = inlined_call_operand.vmem [shape: f32[8,784], index: 0, kind: input, shape index: {}]
  %s1 = inlined_call_operand.vmem [shape: bf16[784,200], index: 1, kind: input, shape index: {}]
  %s2 = inlined_call_operand.vmem [shape: f32[1,200], index: 2, kind: input, shape index: {}]
  %s3 = inlined_call_operand.vmem [shape: f32[1,200], index: 3, kind: input, shape index: {}]
  %s4 = inlined_call_operand.<no memory space> [shape: f32[1,1], index: 4, kind: input, shape index: {}]
  %s5 = inlined_call_operand.vmem [shape: f32[8,1], index: 5, kind: output, shape index: {}]
  %s6 = sld [smem:[#allocation0]]
  $region30: #{tpu_custom_call.1} parent=0
    _
  %s8 = ssub.s32 1, %s6
  %s9 = scalar_select 0, %s8, %s6
  %v10 = vstv %s4
  %11 = vst [vmem:[#allocation2] sm:$0x1] %v10
  // Predicated region
  $region2: #{tpu_custom_call.1} parent=0 // pred_check
    _
  $region3: #{tpu_custom_call.1} parent=0 // pred_check_branch
    %13 = sbr.rel (0) target = $region5
  $region4: #{tpu_custom_call.1} parent=0 // pred_region
    _
  $region5: #{tpu_custom_call.1} parent=0 // pred_fallthru
    _
  // Predicated region
  $region6: #{tpu_custom_call.1} parent=0 // pred_check
    _
  $region7: #{tpu_custom_call.1} parent=0 // pred_check_branch
    %15 = sbr.rel (0) target = $region9
  $region8: #{tpu_custom_call.1} parent=0 // pred_region
    _
  $region9: #{tpu_custom_call.1} parent=0 // pred_fallthru
    _
  // Predicated region
  $region10: #{tpu_custom_call.1} parent=0 // pred_check
    _
  $region11: #{tpu_custom_call.1} parent=0 // pred_check_branch
    %17 = sbr.rel (0) target = $region13
  $region12: #{tpu_custom_call.1} parent=0 // pred_region
    _
  $region13: #{tpu_custom_call.1} parent=0 // pred_fallthru
    _
  // Predicated region
  $region14: #{tpu_custom_call.1} parent=0 // pred_check
    _
  $region15: #{tpu_custom_call.1} parent=0 // pred_check_branch
    %19 = sbr.rel (0) target = $region17
  $region16: #{tpu_custom_call.1} parent=0 // pred_region
    _
  $region17: #{tpu_custom_call.1} parent=0 // pred_fallthru
    _
  // Predicated region
  $region18: #{tpu_custom_call.1} parent=0 // pred_check
    _
  $region19: #{tpu_custom_call.1} parent=0 // pred_check_branch
    %21 = sbr.rel (0) target = $region21
  $region20: #{tpu_custom_call.1} parent=0 // pred_region
    _
  $region21: #{tpu_custom_call.1} parent=0 // pred_fallthru
    _
  %v23 = vld [vmem:[%s0] sm:$0xff]
  %v24 = vld [vmem:[%s0 + $0x8] sm:$0xff]
  %v25 = vld [vmem:[%s0 + $0x10] sm:$0xff]
  %v26 = vld [vmem:[%s0 + $0x18] sm:$0xff]
  %v27 = vld [vmem:[%s0 + $0x20] sm:$0xff]
  %v28 = vld [vmem:[%s0 + $0x28] sm:$0xff]
  %v29 = vld [vmem:[%s0 + $0x30] sm:$0xff]
  %v30 = vpack.c.bf16 %v23, %v23
  %v31 = vpack.c.bf16 %v24, %v24
  %v32 = vpack.c.bf16 %v25, %v25
  %v33 = vpack.c.bf16 %v26, %v26
  %v34 = vpack.c.bf16 %v27, %v27
  %v35 = vpack.c.bf16 %v28, %v28
  %v36 = vpack.c.bf16 %v29, %v29
  %v37 = vld [vmem:[%s1] sm:$0xff]
  %v38 = vld [vmem:[%s1 + $0x8] sm:$0xff]
  %v39 = vld [vmem:[%s1 + $0x10] sm:$0xff]
  %v40 = vld [vmem:[%s1 + $0x18] sm:$0xff]
  %v41 = vld [vmem:[%s1 + $0x20] sm:$0xff]
  %v42 = vld [vmem:[%s1 + $0x28] sm:$0xff]
  %v43 = vld [vmem:[%s1 + $0x30] sm:$0xff]
  %v44 = vld [vmem:[%s1 + $0x38] sm:$0xff]
  %v45 = vld [vmem:[%s1 + $0x40] sm:$0xff]
  %v46 = vld [vmem:[%s1 + $0x48] sm:$0xff]
  %v47 = vld [vmem:[%s1 + $0x50] sm:$0xff]
  %v48 = vld [vmem:[%s1 + $0x58] sm:$0xff]
  %v49 = vld [vmem:[%s1 + $0x60] sm:$0xff]
  %v50 = vld [vmem:[%s1 + $0x68] sm:$0xff]
  %v51 = vld [vmem:[%s1 + $0x70] sm:$0xff]
  %v52 = vld [vmem:[%s1 + $0x78] sm:$0xff]
  %v53 = vld [vmem:[%s1 + $0x80] sm:$0xff]
  %v54 = vld [vmem:[%s1 + $0x88] sm:$0xff]
  %v55 = vld [vmem:[%s1 + $0x90] sm:$0xff]
  %v56 = vld [vmem:[%s1 + $0x98] sm:$0xff]
  %v57 = vld [vmem:[%s1 + $0xa0] sm:$0xff]
  %v58 = vld [vmem:[%s1 + $0xa8] sm:$0xff]
  %v59 = vld [vmem:[%s1 + $0xb0] sm:$0xff]
  %v60 = vld [vmem:[%s1 + $0xb8] sm:$0xff]
  %v61 = vld [vmem:[%s1 + $0xc0] sm:$0xff]
  %v62 = vld [vmem:[%s1 + $0xc8] sm:$0xff]
  %v63 = vld [vmem:[%s1 + $0xd0] sm:$0xff]
  %v64 = vld [vmem:[%s1 + $0xd8] sm:$0xff]
  %v65 = vld [vmem:[%s1 + $0xe0] sm:$0xff]
  %v66 = vld [vmem:[%s1 + $0xe8] sm:$0xff]
  %v67 = vld [vmem:[%s1 + $0xf0] sm:$0xff]
  %v68 = vld [vmem:[%s1 + $0xf8] sm:$0xff]
  %v69 = vld [vmem:[%s1 + $0x100] sm:$0xff]
  %v70 = vld [vmem:[%s1 + $0x108] sm:$0xff]
  %v71 = vld [vmem:[%s1 + $0x110] sm:$0xff]
  %v72 = vld [vmem:[%s1 + $0x118] sm:$0xff]
  %v73 = vld [vmem:[%s1 + $0x120] sm:$0xff]
  %v74 = vld [vmem:[%s1 + $0x128] sm:$0xff]
  %v75 = vld [vmem:[%s1 + $0x130] sm:$0xff]
  %v76 = vld [vmem:[%s1 + $0x138] sm:$0xff]
  %v77 = vld [vmem:[%s1 + $0x140] sm:$0xff]
  %v78 = vld [vmem:[%s1 + $0x148] sm:$0xff]
  %v79 = vld [vmem:[%s1 + $0x150] sm:$0xff]
  %v80 = vld [vmem:[%s1 + $0x158] sm:$0xff]
  %v81 = vld [vmem:[%s1 + $0x160] sm:$0xff]
  %v82 = vld [vmem:[%s1 + $0x168] sm:$0xff]
  %v83 = vld [vmem:[%s1 + $0x170] sm:$0xff]
  %v84 = vld [vmem:[%s1 + $0x178] sm:$0xff]
  %v85 = vld [vmem:[%s1 + $0x180] sm:$0xff]
  %v86 = vld [vmem:[%s1 + $0x188] sm:$0xff]
  %v87 = vld [vmem:[%s1 + $0x190] sm:$0xff]
  %v88 = vld [vmem:[%s1 + $0x198] sm:$0xff]
  %v89 = vld [vmem:[%s1 + $0x1a0] sm:$0xff]
  %v90 = vld [vmem:[%s1 + $0x1a8] sm:$0xff]
  %v91 = vld [vmem:[%s1 + $0x1b0] sm:$0xff]
  %v92 = vld [vmem:[%s1 + $0x1b8] sm:$0xff]
  %v93 = vld [vmem:[%s1 + $0x1c0] sm:$0xff]
  %v94 = vld [vmem:[%s1 + $0x1c8] sm:$0xff]
  %v95 = vld [vmem:[%s1 + $0x1d0] sm:$0xff]
  %v96 = vld [vmem:[%s1 + $0x1d8] sm:$0xff]
  %v97 = vld [vmem:[%s1 + $0x1e0] sm:$0xff]
  %v98 = vld [vmem:[%s1 + $0x1e8] sm:$0xff]
  %v99 = vld [vmem:[%s1 + $0x1f0] sm:$0xff]
  %v100 = vld [vmem:[%s1 + $0x1f8] sm:$0xff]
  %v101 = vld [vmem:[%s1 + $0x200] sm:$0xff]
  %v102 = vld [vmem:[%s1 + $0x208] sm:$0xff]
  %v103 = vld [vmem:[%s1 + $0x210] sm:$0xff]
  %v104 = vld [vmem:[%s1 + $0x218] sm:$0xff]
  %v105 = vld [vmem:[%s1 + $0x220] sm:$0xff]
  %v106 = vld [vmem:[%s1 + $0x228] sm:$0xff]
  %v107 = vld [vmem:[%s1 + $0x230] sm:$0xff]
  %v108 = vld [vmem:[%s1 + $0x238] sm:$0xff]
  %v109 = vld [vmem:[%s1 + $0x240] sm:$0xff]
  %v110 = vld [vmem:[%s1 + $0x248] sm:$0xff]
  %v111 = vld [vmem:[%s1 + $0x250] sm:$0xff]
  %v112 = vld [vmem:[%s1 + $0x258] sm:$0xff]
  %v113 = vld [vmem:[%s1 + $0x260] sm:$0xff]
  %v114 = vld [vmem:[%s1 + $0x268] sm:$0xff]
  %v115 = vld [vmem:[%s1 + $0x270] sm:$0xff]
  %v116 = vld [vmem:[%s1 + $0x278] sm:$0xff]
  %v117 = vld [vmem:[%s1 + $0x280] sm:$0xff]
  %v118 = vld [vmem:[%s1 + $0x288] sm:$0xff]
  %v119 = vld [vmem:[%s1 + $0x290] sm:$0xff]
  %v120 = vld [vmem:[%s1 + $0x298] sm:$0xff]
  %v121 = vld [vmem:[%s1 + $0x2a0] sm:$0xff]
  %v122 = vld [vmem:[%s1 + $0x2a8] sm:$0xff]
  %v123 = vld [vmem:[%s1 + $0x2b0] sm:$0xff]
  %v124 = vld [vmem:[%s1 + $0x2b8] sm:$0xff]
  %v125 = vld [vmem:[%s1 + $0x2c0] sm:$0xff]
  %v126 = vld [vmem:[%s1 + $0x2c8] sm:$0xff]
  %v127 = vld [vmem:[%s1 + $0x2d0] sm:$0xff]
  %v128 = vld [vmem:[%s1 + $0x2d8] sm:$0xff]
  %v129 = vld [vmem:[%s1 + $0x2e0] sm:$0xff]
  %v130 = vld [vmem:[%s1 + $0x2e8] sm:$0xff]
  %v131 = vld [vmem:[%s1 + $0x2f0] sm:$0xff]
  %v132 = vld [vmem:[%s1 + $0x2f8] sm:$0xff]
  %v133 = vld [vmem:[%s1 + $0x300] sm:$0xff]
  %v134 = vld [vmem:[%s1 + $0x308] sm:$0xff]
  %v135 = vld [vmem:[%s2] sm:$0x3]
  %v137 = vperm.slane %v135, 0
  %v138 = vperm.slane %v135, 1
  %v239 = vunpack.c.l.b16 %v37
  %v240 = vunpack.c.h.b16 %v37
  %v241 = vunpack.c.l.b16 %v38
  %v242 = vunpack.c.h.b16 %v38
  %v243 = vunpack.c.l.b16 %v39
  %v244 = vunpack.c.h.b16 %v39
  %v245 = vunpack.c.l.b16 %v40
  %v246 = vunpack.c.h.b16 %v40
  %v247 = vunpack.c.l.b16 %v41
  %v248 = vunpack.c.h.b16 %v41
  %v249 = vunpack.c.l.b16 %v42
  %v250 = vunpack.c.h.b16 %v42
  %v251 = vunpack.c.l.b16 %v43
  %v252 = vunpack.c.h.b16 %v43
  %v253 = vunpack.c.l.b16 %v44
  %v254 = vunpack.c.h.b16 %v44
  %v255 = vunpack.c.l.b16 %v45
  %v256 = vunpack.c.h.b16 %v45
  %v257 = vunpack.c.l.b16 %v46
  %v258 = vunpack.c.h.b16 %v46
  %v259 = vunpack.c.l.b16 %v47
  %v260 = vunpack.c.h.b16 %v47
  %v261 = vunpack.c.l.b16 %v48
  %v262 = vunpack.c.h.b16 %v48
  %v263 = vunpack.c.l.b16 %v49
  %v264 = vunpack.c.h.b16 %v49
  %v265 = vunpack.c.l.b16 %v50
  %v266 = vunpack.c.h.b16 %v50
  %v267 = vunpack.c.l.b16 %v51
  %v268 = vunpack.c.h.b16 %v51
  %v269 = vunpack.c.l.b16 %v52
  %v270 = vunpack.c.h.b16 %v52
  %v271 = vunpack.c.l.b16 %v53
  %v272 = vunpack.c.h.b16 %v53
  %v273 = vunpack.c.l.b16 %v54
  %v274 = vunpack.c.h.b16 %v54
  %v275 = vunpack.c.l.b16 %v55
  %v276 = vunpack.c.h.b16 %v55
  %v277 = vunpack.c.l.b16 %v56
  %v278 = vunpack.c.h.b16 %v56
  %v279 = vunpack.c.l.b16 %v57
  %v280 = vunpack.c.h.b16 %v57
  %v281 = vunpack.c.l.b16 %v58
  %v282 = vunpack.c.h.b16 %v58
  %v283 = vunpack.c.l.b16 %v59
  %v284 = vunpack.c.h.b16 %v59
  %v285 = vunpack.c.l.b16 %v60
  %v286 = vunpack.c.h.b16 %v60
  %v287 = vunpack.c.l.b16 %v61
  %v288 = vunpack.c.h.b16 %v61
  %v289 = vunpack.c.l.b16 %v62
  %v290 = vunpack.c.h.b16 %v62
  %v291 = vunpack.c.l.b16 %v63
  %v292 = vunpack.c.h.b16 %v63
  %v293 = vunpack.c.l.b16 %v64
  %v294 = vunpack.c.h.b16 %v64
  %v295 = vunpack.c.l.b16 %v65
  %v296 = vunpack.c.h.b16 %v65
  %v297 = vunpack.c.l.b16 %v66
  %v298 = vunpack.c.h.b16 %v66
  %v299 = vunpack.c.l.b16 %v67
  %v300 = vunpack.c.h.b16 %v67
  %v301 = vunpack.c.l.b16 %v68
  %v302 = vunpack.c.h.b16 %v68
  %v303 = vunpack.c.l.b16 %v69
  %v304 = vunpack.c.h.b16 %v69
  %v305 = vunpack.c.l.b16 %v70
  %v306 = vunpack.c.h.b16 %v70
  %v307 = vunpack.c.l.b16 %v71
  %v308 = vunpack.c.h.b16 %v71
  %v309 = vunpack.c.l.b16 %v72
  %v310 = vunpack.c.h.b16 %v72
  %v311 = vunpack.c.l.b16 %v73
  %v312 = vunpack.c.h.b16 %v73
  %v313 = vunpack.c.l.b16 %v74
  %v314 = vunpack.c.h.b16 %v74
  %v315 = vunpack.c.l.b16 %v75
  %v316 = vunpack.c.h.b16 %v75
  %v317 = vunpack.c.l.b16 %v76
  %v318 = vunpack.c.h.b16 %v76
  %v319 = vunpack.c.l.b16 %v77
  %v320 = vunpack.c.h.b16 %v77
  %v321 = vunpack.c.l.b16 %v78
  %v322 = vunpack.c.h.b16 %v78
  %v323 = vunpack.c.l.b16 %v79
  %v324 = vunpack.c.h.b16 %v79
  %v325 = vunpack.c.l.b16 %v80
  %v326 = vunpack.c.h.b16 %v80
  %v327 = vunpack.c.l.b16 %v81
  %v328 = vunpack.c.h.b16 %v81
  %v329 = vunpack.c.l.b16 %v82
  %v330 = vunpack.c.h.b16 %v82
  %v331 = vunpack.c.l.b16 %v83
  %v332 = vunpack.c.h.b16 %v83
  %v333 = vunpack.c.l.b16 %v84
  %v334 = vunpack.c.h.b16 %v84
  %v335 = vunpack.c.l.b16 %v85
  %v336 = vunpack.c.h.b16 %v85
  %v337 = vunpack.c.l.b16 %v86
  %v338 = vunpack.c.h.b16 %v86
  %v339 = vunpack.c.l.b16 %v87
  %v340 = vunpack.c.h.b16 %v87
  %v341 = vunpack.c.l.b16 %v88
  %v342 = vunpack.c.h.b16 %v88
  %v343 = vunpack.c.l.b16 %v89
  %v344 = vunpack.c.h.b16 %v89
  %v345 = vunpack.c.l.b16 %v90
  %v346 = vunpack.c.h.b16 %v90
  %v347 = vunpack.c.l.b16 %v91
  %v348 = vunpack.c.h.b16 %v91
  %v349 = vunpack.c.l.b16 %v92
  %v350 = vunpack.c.h.b16 %v92
  %v351 = vunpack.c.l.b16 %v93
  %v352 = vunpack.c.h.b16 %v93
  %v353 = vunpack.c.l.b16 %v94
  %v354 = vunpack.c.h.b16 %v94
  %v355 = vunpack.c.l.b16 %v95
  %v356 = vunpack.c.h.b16 %v95
  %v357 = vunpack.c.l.b16 %v96
  %v358 = vunpack.c.h.b16 %v96
  %v359 = vunpack.c.l.b16 %v97
  %v360 = vunpack.c.h.b16 %v97
  %v361 = vunpack.c.l.b16 %v98
  %v362 = vunpack.c.h.b16 %v98
  %v363 = vunpack.c.l.b16 %v99
  %v364 = vunpack.c.h.b16 %v99
  %v365 = vunpack.c.l.b16 %v100
  %v366 = vunpack.c.h.b16 %v100
  %v367 = vunpack.c.l.b16 %v101
  %v368 = vunpack.c.h.b16 %v101
  %v369 = vunpack.c.l.b16 %v102
  %v370 = vunpack.c.h.b16 %v102
  %v371 = vunpack.c.l.b16 %v103
  %v372 = vunpack.c.h.b16 %v103
  %v373 = vunpack.c.l.b16 %v104
  %v374 = vunpack.c.h.b16 %v104
  %v375 = vunpack.c.l.b16 %v105
  %v376 = vunpack.c.h.b16 %v105
  %v377 = vunpack.c.l.b16 %v106
  %v378 = vunpack.c.h.b16 %v106
  %v379 = vunpack.c.l.b16 %v107
  %v380 = vunpack.c.h.b16 %v107
  %v381 = vunpack.c.l.b16 %v108
  %v382 = vunpack.c.h.b16 %v108
  %v383 = vunpack.c.l.b16 %v109
  %v384 = vunpack.c.h.b16 %v109
  %v385 = vunpack.c.l.b16 %v110
  %v386 = vunpack.c.h.b16 %v110
  %v387 = vunpack.c.l.b16 %v111
  %v388 = vunpack.c.h.b16 %v111
  %v389 = vunpack.c.l.b16 %v112
  %v390 = vunpack.c.h.b16 %v112
  %v391 = vunpack.c.l.b16 %v113
  %v392 = vunpack.c.h.b16 %v113
  %v393 = vunpack.c.l.b16 %v114
  %v394 = vunpack.c.h.b16 %v114
  %v395 = vunpack.c.l.b16 %v115
  %v396 = vunpack.c.h.b16 %v115
  %v397 = vunpack.c.l.b16 %v116
  %v398 = vunpack.c.h.b16 %v116
  %v399 = vunpack.c.l.b16 %v117
  %v400 = vunpack.c.h.b16 %v117
  %v401 = vunpack.c.l.b16 %v118
  %v402 = vunpack.c.h.b16 %v118
  %v403 = vunpack.c.l.b16 %v119
  %v404 = vunpack.c.h.b16 %v119
  %v405 = vunpack.c.l.b16 %v120
  %v406 = vunpack.c.h.b16 %v120
  %v407 = vunpack.c.l.b16 %v121
  %v408 = vunpack.c.h.b16 %v121
  %v409 = vunpack.c.l.b16 %v122
  %v410 = vunpack.c.h.b16 %v122
  %v411 = vunpack.c.l.b16 %v123
  %v412 = vunpack.c.h.b16 %v123
  %v413 = vunpack.c.l.b16 %v124
  %v414 = vunpack.c.h.b16 %v124
  %v415 = vunpack.c.l.b16 %v125
  %v416 = vunpack.c.h.b16 %v125
  %v417 = vunpack.c.l.b16 %v126
  %v418 = vunpack.c.h.b16 %v126
  %v419 = vunpack.c.l.b16 %v127
  %v420 = vunpack.c.h.b16 %v127
  %v421 = vunpack.c.l.b16 %v128
  %v422 = vunpack.c.h.b16 %v128
  %v423 = vunpack.c.l.b16 %v129
  %v424 = vunpack.c.h.b16 %v129
  %v425 = vunpack.c.l.b16 %v130
  %v426 = vunpack.c.h.b16 %v130
  %v427 = vunpack.c.l.b16 %v131
  %v428 = vunpack.c.h.b16 %v131
  %v429 = vunpack.c.l.b16 %v132
  %v430 = vunpack.c.h.b16 %v132
  %v431 = vunpack.c.l.b16 %v133
  %v432 = vunpack.c.h.b16 %v133
  %v433 = vunpack.c.l.b16 %v134
  %v434 = vunpack.c.h.b16 %v134
  %v435 = vpack.c.b16 %v241, %v239
  %v436 = vpack.c.b16 %v242, %v240
  %v437 = vpack.c.b16 %v245, %v243
  %v438 = vpack.c.b16 %v246, %v244
  %v439 = vpack.c.b16 %v249, %v247
  %v440 = vpack.c.b16 %v250, %v248
  %v441 = vpack.c.b16 %v253, %v251
  %v442 = vpack.c.b16 %v254, %v252
  %v443 = vpack.c.b16 %v257, %v255
  %v444 = vpack.c.b16 %v258, %v256
  %v445 = vpack.c.b16 %v261, %v259
  %v446 = vpack.c.b16 %v262, %v260
  %v447 = vpack.c.b16 %v265, %v263
  %v448 = vpack.c.b16 %v266, %v264
  %v449 = vpack.c.b16 %v269, %v267
  %v450 = vpack.c.b16 %v270, %v268
  %v451 = vpack.c.b16 %v273, %v271
  %v452 = vpack.c.b16 %v274, %v272
  %v453 = vpack.c.b16 %v277, %v275
  %v454 = vpack.c.b16 %v278, %v276
  %v455 = vpack.c.b16 %v281, %v279
  %v456 = vpack.c.b16 %v282, %v280
  %v457 = vpack.c.b16 %v285, %v283
  %v458 = vpack.c.b16 %v286, %v284
  %v459 = vpack.c.b16 %v289, %v287
  %v460 = vpack.c.b16 %v290, %v288
  %v461 = vpack.c.b16 %v293, %v291
  %v462 = vpack.c.b16 %v294, %v292
  %v463 = vpack.c.b16 %v297, %v295
  %v464 = vpack.c.b16 %v298, %v296
  %v465 = vpack.c.b16 %v301, %v299
  %v466 = vpack.c.b16 %v302, %v300
  %v467 = vpack.c.b16 %v305, %v303
  %v468 = vpack.c.b16 %v306, %v304
  %v469 = vpack.c.b16 %v309, %v307
  %v470 = vpack.c.b16 %v310, %v308
  %v471 = vpack.c.b16 %v313, %v311
  %v472 = vpack.c.b16 %v314, %v312
  %v473 = vpack.c.b16 %v317, %v315
  %v474 = vpack.c.b16 %v318, %v316
  %v475 = vpack.c.b16 %v321, %v319
  %v476 = vpack.c.b16 %v322, %v320
  %v477 = vpack.c.b16 %v325, %v323
  %v478 = vpack.c.b16 %v326, %v324
  %v479 = vpack.c.b16 %v329, %v327
  %v480 = vpack.c.b16 %v330, %v328
  %v481 = vpack.c.b16 %v333, %v331
  %v482 = vpack.c.b16 %v334, %v332
  %v483 = vpack.c.b16 %v337, %v335
  %v484 = vpack.c.b16 %v338, %v336
  %v485 = vpack.c.b16 %v341, %v339
  %v486 = vpack.c.b16 %v342, %v340
  %v487 = vpack.c.b16 %v345, %v343
  %v488 = vpack.c.b16 %v346, %v344
  %v489 = vpack.c.b16 %v349, %v347
  %v490 = vpack.c.b16 %v350, %v348
  %v491 = vpack.c.b16 %v353, %v351
  %v492 = vpack.c.b16 %v354, %v352
  %v493 = vpack.c.b16 %v357, %v355
  %v494 = vpack.c.b16 %v358, %v356
  %v495 = vpack.c.b16 %v361, %v359
  %v496 = vpack.c.b16 %v362, %v360
  %v497 = vpack.c.b16 %v365, %v363
  %v498 = vpack.c.b16 %v366, %v364
  %v499 = vpack.c.b16 %v369, %v367
  %v500 = vpack.c.b16 %v370, %v368
  %v501 = vpack.c.b16 %v373, %v371
  %v502 = vpack.c.b16 %v374, %v372
  %v503 = vpack.c.b16 %v377, %v375
  %v504 = vpack.c.b16 %v378, %v376
  %v505 = vpack.c.b16 %v381, %v379
  %v506 = vpack.c.b16 %v382, %v380
  %v507 = vpack.c.b16 %v385, %v383
  %v508 = vpack.c.b16 %v386, %v384
  %v509 = vpack.c.b16 %v389, %v387
  %v510 = vpack.c.b16 %v390, %v388
  %v511 = vpack.c.b16 %v393, %v391
  %v512 = vpack.c.b16 %v394, %v392
  %v513 = vpack.c.b16 %v397, %v395
  %v514 = vpack.c.b16 %v398, %v396
  %v515 = vpack.c.b16 %v401, %v399
  %v516 = vpack.c.b16 %v402, %v400
  %v517 = vpack.c.b16 %v405, %v403
  %v518 = vpack.c.b16 %v406, %v404
  %v519 = vpack.c.b16 %v409, %v407
  %v520 = vpack.c.b16 %v410, %v408
  %v521 = vpack.c.b16 %v413, %v411
  %v522 = vpack.c.b16 %v414, %v412
  %v523 = vpack.c.b16 %v417, %v415
  %v524 = vpack.c.b16 %v418, %v416
  %v525 = vpack.c.b16 %v421, %v419
  %v526 = vpack.c.b16 %v422, %v420
  %v527 = vpack.c.b16 %v425, %v423
  %v528 = vpack.c.b16 %v426, %v424
  %v529 = vpack.c.b16 %v429, %v427
  %v530 = vpack.c.b16 %v430, %v428
  %v531 = vpack.c.b16 %v433, %v431
  %v532 = vpack.c.b16 %v434, %v432
  %vm631 = vcmask 130048
  %v633 = vsel %vm631, %v36, 0
  %635 = vmatpush.bf16.msra.mxu0 %v449
  %636 = vmatpush.bf16.msra.mxu0 %v447
  %637 = vmatpush.bf16.msra.mxu0 %v445
  %638 = vmatpush.bf16.msra.mxu0 %v443
  %639 = vmatpush.bf16.msra.mxu0 %v441
  %640 = vmatpush.bf16.msra.mxu0 %v439
  %641 = vmatpush.bf16.msra.mxu0 %v437
  %642 = vmatpush.bf16.msra.mxu0 %v435
  %643 = vmatmul.bf16.gmra.mxu0 %v30
  %v644 = vpop.f32.mrf.mxu0
  %v645 = vadd.f32 %v137, %v644
  %v646 = vpop.f32.mrf.mxu0
  %647 = vdwg.mxu0
  %648 = vmatpush.bf16.msra.mxu0 %v465
  %649 = vmatpush.bf16.msra.mxu0 %v463
  %650 = vmatpush.bf16.msra.mxu0 %v461
  %651 = vmatpush.bf16.msra.mxu0 %v459
  %652 = vmatpush.bf16.msra.mxu0 %v457
  %653 = vmatpush.bf16.msra.mxu0 %v455
  %654 = vmatpush.bf16.msra.mxu0 %v453
  %655 = vmatpush.bf16.msra.mxu0 %v451
  %656 = vmatmul.bf16.gmra.mxu0 %v31
  %v657 = vpop.f32.mrf.mxu0
  %v658 = vadd.f32 %v645, %v657
  %v659 = vpop.f32.mrf.mxu0
  %660 = vdwg.mxu0
  %661 = vmatpush.bf16.msra.mxu0 %v481
  %662 = vmatpush.bf16.msra.mxu0 %v479
  %663 = vmatpush.bf16.msra.mxu0 %v477
  %664 = vmatpush.bf16.msra.mxu0 %v475
  %665 = vmatpush.bf16.msra.mxu0 %v473
  %666 = vmatpush.bf16.msra.mxu0 %v471
  %667 = vmatpush.bf16.msra.mxu0 %v469
  %668 = vmatpush.bf16.msra.mxu0 %v467
  %669 = vmatmul.bf16.gmra.mxu0 %v32
  %v670 = vpop.f32.mrf.mxu0
  %v671 = vadd.f32 %v658, %v670
  %v672 = vpop.f32.mrf.mxu0
  %673 = vdwg.mxu0
  %674 = vmatpush.bf16.msra.mxu0 %v497
  %675 = vmatpush.bf16.msra.mxu0 %v495
  %676 = vmatpush.bf16.msra.mxu0 %v493
  %677 = vmatpush.bf16.msra.mxu0 %v491
  %678 = vmatpush.bf16.msra.mxu0 %v489
  %679 = vmatpush.bf16.msra.mxu0 %v487
  %680 = vmatpush.bf16.msra.mxu0 %v485
  %681 = vmatpush.bf16.msra.mxu0 %v483
  %682 = vmatmul.bf16.gmra.mxu0 %v33
  %v683 = vpop.f32.mrf.mxu0
  %v684 = vadd.f32 %v671, %v683
  %v685 = vpop.f32.mrf.mxu0
  %686 = vdwg.mxu0
  %687 = vmatpush.bf16.msra.mxu0 %v513
  %688 = vmatpush.bf16.msra.mxu0 %v511
  %689 = vmatpush.bf16.msra.mxu0 %v509
  %690 = vmatpush.bf16.msra.mxu0 %v507
  %691 = vmatpush.bf16.msra.mxu0 %v505
  %692 = vmatpush.bf16.msra.mxu0 %v503
  %693 = vmatpush.bf16.msra.mxu0 %v501
  %694 = vmatpush.bf16.msra.mxu0 %v499
  %695 = vmatmul.bf16.gmra.mxu0 %v34
  %v696 = vpop.f32.mrf.mxu0
  %v697 = vadd.f32 %v684, %v696
  %v698 = vpop.f32.mrf.mxu0
  %699 = vdwg.mxu0
  %700 = vmatpush.bf16.msra.mxu0 %v529
  %701 = vmatpush.bf16.msra.mxu0 %v527
  %702 = vmatpush.bf16.msra.mxu0 %v525
  %703 = vmatpush.bf16.msra.mxu0 %v523
  %704 = vmatpush.bf16.msra.mxu0 %v521
  %705 = vmatpush.bf16.msra.mxu0 %v519
  %706 = vmatpush.bf16.msra.mxu0 %v517
  %707 = vmatpush.bf16.msra.mxu0 %v515
  %708 = vmatmul.bf16.gmra.mxu0 %v35
  %v709 = vpop.f32.mrf.mxu0
  %v710 = vadd.f32 %v697, %v709
  %v711 = vpop.f32.mrf.mxu0
  %712 = vdwg.mxu0
  %713 = vmatpush.bf16.msra.mxu0 0
  %714 = vmatpush.bf16.msra.mxu0 0
  %715 = vmatpush.bf16.msra.mxu0 0
  %716 = vmatpush.bf16.msra.mxu0 0
  %717 = vmatpush.bf16.msra.mxu0 0
  %718 = vmatpush.bf16.msra.mxu0 0
  %719 = vmatpush.bf16.msra.mxu0 0
  %720 = vmatpush.bf16.msra.mxu0 %v531
  %721 = vmatmul.bf16.gmra.mxu0 %v633
  %v722 = vpop.f32.mrf.mxu0
  %v723 = vadd.f32 %v710, %v722
  %v724 = vpop.f32.mrf.mxu0
  %725 = vdwg.mxu0
  %726 = vmatpush.bf16.msra.mxu0 %v450
  %727 = vmatpush.bf16.msra.mxu0 %v448
  %728 = vmatpush.bf16.msra.mxu0 %v446
  %729 = vmatpush.bf16.msra.mxu0 %v444
  %730 = vmatpush.bf16.msra.mxu0 %v442
  %731 = vmatpush.bf16.msra.mxu0 %v440
  %732 = vmatpush.bf16.msra.mxu0 %v438
  %733 = vmatpush.bf16.msra.mxu0 %v436
  %734 = vmatmul.bf16.gmra.mxu0 %v30
  %v735 = vpop.f32.mrf.mxu0
  %v736 = vadd.f32 %v138, %v735
  %v737 = vpop.f32.mrf.mxu0
  %738 = vdwg.mxu0
  %739 = vmatpush.bf16.msra.mxu0 %v466
  %740 = vmatpush.bf16.msra.mxu0 %v464
  %741 = vmatpush.bf16.msra.mxu0 %v462
  %742 = vmatpush.bf16.msra.mxu0 %v460
  %743 = vmatpush.bf16.msra.mxu0 %v458
  %744 = vmatpush.bf16.msra.mxu0 %v456
  %745 = vmatpush.bf16.msra.mxu0 %v454
  %746 = vmatpush.bf16.msra.mxu0 %v452
  %747 = vmatmul.bf16.gmra.mxu0 %v31
  %v748 = vpop.f32.mrf.mxu0
  %v749 = vadd.f32 %v736, %v748
  %v750 = vpop.f32.mrf.mxu0
  %751 = vdwg.mxu0
  %752 = vmatpush.bf16.msra.mxu0 %v482
  %753 = vmatpush.bf16.msra.mxu0 %v480
  %754 = vmatpush.bf16.msra.mxu0 %v478
  %755 = vmatpush.bf16.msra.mxu0 %v476
  %756 = vmatpush.bf16.msra.mxu0 %v474
  %757 = vmatpush.bf16.msra.mxu0 %v472
  %758 = vmatpush.bf16.msra.mxu0 %v470
  %759 = vmatpush.bf16.msra.mxu0 %v468
  %760 = vmatmul.bf16.gmra.mxu0 %v32
  %v761 = vpop.f32.mrf.mxu0
  %v762 = vadd.f32 %v749, %v761
  %v763 = vpop.f32.mrf.mxu0
  %764 = vdwg.mxu0
  %765 = vmatpush.bf16.msra.mxu0 %v498
  %766 = vmatpush.bf16.msra.mxu0 %v496
  %767 = vmatpush.bf16.msra.mxu0 %v494
  %768 = vmatpush.bf16.msra.mxu0 %v492
  %769 = vmatpush.bf16.msra.mxu0 %v490
  %770 = vmatpush.bf16.msra.mxu0 %v488
  %771 = vmatpush.bf16.msra.mxu0 %v486
  %772 = vmatpush.bf16.msra.mxu0 %v484
  %773 = vmatmul.bf16.gmra.mxu0 %v33
  %v774 = vpop.f32.mrf.mxu0
  %v775 = vadd.f32 %v762, %v774
  %v776 = vpop.f32.mrf.mxu0
  %777 = vdwg.mxu0
  %778 = vmatpush.bf16.msra.mxu0 %v514
  %779 = vmatpush.bf16.msra.mxu0 %v512
  %780 = vmatpush.bf16.msra.mxu0 %v510
  %781 = vmatpush.bf16.msra.mxu0 %v508
  %782 = vmatpush.bf16.msra.mxu0 %v506
  %783 = vmatpush.bf16.msra.mxu0 %v504
  %784 = vmatpush.bf16.msra.mxu0 %v502
  %785 = vmatpush.bf16.msra.mxu0 %v500
  %786 = vmatmul.bf16.gmra.mxu0 %v34
  %v787 = vpop.f32.mrf.mxu0
  %v788 = vadd.f32 %v775, %v787
  %v789 = vpop.f32.mrf.mxu0
  %790 = vdwg.mxu0
  %791 = vmatpush.bf16.msra.mxu0 %v530
  %792 = vmatpush.bf16.msra.mxu0 %v528
  %793 = vmatpush.bf16.msra.mxu0 %v526
  %794 = vmatpush.bf16.msra.mxu0 %v524
  %795 = vmatpush.bf16.msra.mxu0 %v522
  %796 = vmatpush.bf16.msra.mxu0 %v520
  %797 = vmatpush.bf16.msra.mxu0 %v518
  %798 = vmatpush.bf16.msra.mxu0 %v516
  %799 = vmatmul.bf16.gmra.mxu0 %v35
  %v800 = vpop.f32.mrf.mxu0
  %v801 = vadd.f32 %v788, %v800
  %v802 = vpop.f32.mrf.mxu0
  %803 = vdwg.mxu0
  %804 = vmatpush.bf16.msra.mxu0 0
  %805 = vmatpush.bf16.msra.mxu0 0
  %806 = vmatpush.bf16.msra.mxu0 0
  %807 = vmatpush.bf16.msra.mxu0 0
  %808 = vmatpush.bf16.msra.mxu0 0
  %809 = vmatpush.bf16.msra.mxu0 0
  %810 = vmatpush.bf16.msra.mxu0 0
  %811 = vmatpush.bf16.msra.mxu0 %v532
  %812 = vmatmul.bf16.gmra.mxu0 %v633
  %v813 = vpop.f32.mrf.mxu0
  %v814 = vadd.f32 %v801, %v813
  %v815 = vpop.f32.mrf.mxu0
  %816 = vdwg.mxu0
  %vm817 = vcmp.gt.f32.partialorder %v723, 0.0
  %vm818 = vcmp.gt.f32.partialorder %v814, 0.0
  %v819 = vmul.f32 %v723, 0.02
  %v820 = vmul.f32 %v814, 0.02
  %v821 = vsel %vm817, %v723, %v819
  %v822 = vsel %vm818, %v814, %v820
  %vm823 = vcmask 588800
  %v824 = vsel %vm823, %v822, 0.0
  %v825 = vadd.f32 %v821, %v824
  %826 = vadd.xlane.f32.xlu0 %v825
  %v827 = vpop.xlane.xlu0 %826
  %v828 = vmul.f32 %v821, %v821
  %v829 = vmul.f32 %v822, %v822
  %v830 = vsel %vm823, %v829, 0.0
  %v831 = vadd.f32 %v828, %v830
  %832 = vadd.xlane.f32.xlu0 %v831
  %v833 = vpop.xlane.xlu0 %832
  %v834 = vmul.f32 %v827, 0.005
  %v835 = vmul.f32 %v833, 0.005
  %v836 = vmul.f32 %v834, %v834
  %v837 = vsub.f32 %v835, %v836
  %v838 = vmax.f32 %v837, 0.0
  %v839 = vadd.f32 %v838, 1e-05
  %v840 = vrsqrt.pop %v839
  %v841 = vmul.f32 %v840, %v839
  %v842 = vmul.f32 %v841, %v840
  %v843 = vmul.f32 0.5, %v842
  %v844 = vsub.f32 1.5, %v843
  %v845 = vmul.f32 %v840, %v844
  %vm846 = vweird.f32 %v839
  %vm847 = vweird.f32 %v840
  %vm848 = vmor %vm846, %vm847
  %v849 = vsel %vm848, %v840, %v845
  %v850 = vsub.f32 %v821, %v834
  %v851 = vsub.f32 %v822, %v834
  %v852 = vmul.f32 %v850, %v849
  %v853 = vmul.f32 %v851, %v849
  %v854 = vld [vmem:[%s3] sm:$0x3]
  %v856 = vperm.slane %v854, 0
  %v857 = vperm.slane %v854, 1
  %v860 = vmul.f32 %v852, %v856
  %v861 = vmul.f32 %v853, %v857
  %v862 = vsel %vm823, %v861, 0.0
  %v863 = vadd.f32 %v860, %v862
  %864 = vadd.xlane.f32.xlu0 %v863
  %v865 = vpop.xlane.xlu0 %864
  %v866 = vld [vmem:[#allocation2] sm:$0x1]
  %v868 = vperm.slane %v866, 0
  %v870 = vadd.f32 %v865, %v868
  %v871 = vsub.f32 0.0, %v870
  %v872 = vmul.f32 %v871, 1.442695
  %v873 = vpow.pop %v872
  %v874 = vadd.f32 %v873, 1.0
  %v875 = vrcp.pop %v874
  %v876 = vmul.f32 %v874, %v875
  %v877 = vsub.f32 1.0, %v876
  %v878 = vmul.f32 %v875, %v877
  %v879 = vadd.f32 %v875, %v878
  %vm880 = vweird.f32 %v874
  %vm881 = vweird.f32 %v875
  %vm882 = vmor %vm880, %vm881
  %v883 = vsel %vm882, %v875, %v879
  %v884 = vand.u32 2147483647, %v874
  %vm885 = vcmp.eq.f32.partialorder %v884, 8.507059e+37
  %v886 = vand.u32 %v874, 2147483648
  %v887 = vor.u32 1.1754944e-38, %v886
  %v888 = vsel %vm885, %v887, %v883
  %v889 = vmul.f32 1.0, %v888
  %vm890 = vcmask 7168
  %891 = vst.msk [vmem:[%s5] sm:$0xff] %vm890, %v889
  // Predicated region
  $region22: #{tpu_custom_call.1} parent=0 // pred_check
    _
  $region23: #{tpu_custom_call.1} parent=0 // pred_check_branch
    %893 = sbr.rel (0) target = $region25
  $region24: #{tpu_custom_call.1} parent=0 // pred_region
    _
  $region25: #{tpu_custom_call.1} parent=0 // pred_fallthru
    _
  // Predicated region
  $region26: #{tpu_custom_call.1} parent=0 // pred_check
    _
  $region27: #{tpu_custom_call.1} parent=0 // pred_check_branch
    %895 = sbr.rel (0) target = $region29
  $region28: #{tpu_custom_call.1} parent=0 // pred_region
    _
  $region29: #{tpu_custom_call.1} parent=0 // pred_fallthru
    _

</llo_original>
